<compile_context>
chip_gen: v7x
topology: tpu7x:2x2x1
jax: 0.10.0
libtpu: 0.0.40
codegen_flags: <defaults>
</compile_context>

<pallas_src>
import functools

import jax
import jax.numpy as jnp
from jax import lax
from jax.experimental import pallas as pl
from jax.experimental.pallas import tpu as pltpu


def _round_up(x: int, m: int) -> int:
    return ((x + m - 1) // m) * m


def _multi_precision_block_kernel(logits_ref, labels_ref, out_ref, *,
                                  chunk_rows: int, n_chunks: int,
                                  num_classes: int):
    """One batch tile -> per-class partial [tp; predicted-count] as (1,2,C) int32."""
    c = num_classes
    ch = chunk_rows

    # Loop-invariant class-id iota (hoisted: JAX does not CSE broadcasts).
    class_ids = lax.broadcasted_iota(jnp.int32, (ch, c), 1)          # (CH, C)

    def chunk_body(k, carry):
        tp_acc, cnt_acc = carry
        r0 = pl.multiple_of(k * ch, ch)
        logits_c = logits_ref[pl.ds(r0, ch), :]                      # (CH, C)
        labels_c = labels_ref[pl.ds(r0, ch), :]                      # (CH, 1)

        # argmax over classes on raw logits, first-index tie-break.
        row_max = jnp.max(logits_c, axis=1, keepdims=True)           # (CH, 1)
        masked_ids = jnp.where(logits_c == row_max, class_ids, c)
        pred = jnp.min(masked_ids, axis=1, keepdims=True)            # (CH, 1)

        is_pred = class_ids == pred                                  # (CH, C) bool
        correct = pred == labels_c                                   # (CH, 1) bool

        cnt_acc = cnt_acc + jnp.sum(is_pred.astype(jnp.int32),
                                    axis=0, keepdims=True)           # (1, C)
        tp_acc = tp_acc + jnp.sum((is_pred & correct).astype(jnp.int32),
                                  axis=0, keepdims=True)             # (1, C)
        return tp_acc, cnt_acc

    zeros = jnp.zeros((1, c), jnp.int32)
    tp, cnt = lax.fori_loop(0, n_chunks, chunk_body, (zeros, zeros),
                            unroll=(n_chunks <= 8))

    out_ref[...] = jnp.concatenate([tp, cnt], axis=0).reshape(1, 2, c)


def multi_precision(logits: jax.Array, labels: jax.Array, num_classes: int,
                    average: str = "macro") -> jax.Array:
    """Macro precision metric. logits: (B, C) float, labels: (B,) int."""
    assert logits.ndim == 2, "(B, F)"
    assert labels.ndim == 1, "(B,)"
    if average != "macro":
        raise NotImplementedError(average)
    B, C = logits.shape
    assert num_classes == C, "num_classes must match logit width"

    # Keep the caller's (narrow) float dtype; only ints get promoted.
    if not jnp.issubdtype(logits.dtype, jnp.floating):
        logits = logits.astype(jnp.float32)
    labels_2d = labels.astype(jnp.int32).reshape(-1, 1)

    itemsize = jnp.dtype(logits.dtype).itemsize
    lanes = _round_up(C, 128)                 # lane-padded VMEM width (>=128)
    # Double-buffered VMEM bytes per batch row: logits window + labels window
    # (a (tb,1) int32 tile lane-pads to 128 lanes, which often dominates).
    row_vmem = 2 * lanes * itemsize + 2 * 128 * 4

    # Compute-chunk rows (bounds 32-bit intermediates); tiny batches collapse
    # to a single chunk covering the whole (8-rounded) batch.
    CH = 256 if _round_up(B, 8) >= 256 else _round_up(B, 8)

    VMEM_IO_BUDGET = 24 * 1024 * 1024         # fits v5e/v6e/v7x with margin
    rows_budget = max(8, (VMEM_IO_BUDGET // row_vmem) // 8 * 8)
    if rows_budget < CH:                      # pathological C: shrink the chunk
        CH = rows_budget

    b_ch = _round_up(B, CH)
    tb = max(CH, (rows_budget // CH) * CH)    # no arbitrary row cap
    tb = min(tb, b_ch)

    # Keep several grid steps once the batch is large enough so the "parallel"
    # grid axis can feed both TensorCores (v7x megacore).
    min_blocks = 4 if b_ch >= 8 * CH else (2 if b_ch >= 2 * CH else 1)
    if pl.cdiv(b_ch, tb) < min_blocks:
        tb = max(CH, _round_up(pl.cdiv(b_ch, min_blocks), CH))

    b_pad = _round_up(b_ch, tb)
    n_blocks = b_pad // tb
    n_chunks = tb // CH
    n_pad = b_pad - B
    if n_pad:
        # Zero-padded rows argmax to class 0 and carry label 0; their exact
        # contribution (+n_pad to tp[0] and cnt[0]) is subtracted below, so
        # no per-row valid mask is needed inside the kernel.
        logits = jnp.pad(logits, ((0, n_pad), (0, 0)))
        labels_2d = jnp.pad(labels_2d, ((0, n_pad), (0, 0)))

    kernel = functools.partial(_multi_precision_block_kernel,
                               chunk_rows=CH, n_chunks=n_chunks,
                               num_classes=C)

    # Explicit VMEM limit: double-buffered I/O windows + margin for the
    # per-chunk intermediates and the tiny output block.
    vmem_limit = (2 * tb * lanes * itemsize + 2 * tb * 128 * 4) + (8 << 20)

    parts = pl.pallas_call(
        kernel,
        out_shape=jax.ShapeDtypeStruct((n_blocks, 2, C), jnp.int32),
        grid_spec=pltpu.PrefetchScalarGridSpec(
            num_scalar_prefetch=0,
            grid=(n_blocks,),
            in_specs=[
                pl.BlockSpec((tb, C), lambda i: (i, 0)),
                pl.BlockSpec((tb, 1), lambda i: (i, 0)),
            ],
            out_specs=pl.BlockSpec((1, 2, C), lambda i: (i, 0, 0)),
        ),
        compiler_params=pltpu.CompilerParams(
            dimension_semantics=("parallel",),
            vmem_limit_bytes=int(vmem_limit)),
    )(logits, labels_2d)

    # ---- tiny final reduce (n_blocks*2*C ints) in plain JAX ----
    totals = jnp.sum(parts, axis=0)                        # (2, C) int32
    tp = totals[0].astype(jnp.float32)
    cnt = totals[1].astype(jnp.float32)
    if n_pad:
        pad = jnp.float32(n_pad)
        tp = tp.at[0].add(-pad)                            # remove pad rows
        cnt = cnt.at[0].add(-pad)
    safe = jnp.where(cnt > 0.0, cnt, 1.0)
    prec = jnp.where(cnt > 0.0, tp / safe, 0.0)            # NaN (0/0) -> 0
    return jnp.sum(prec) / jnp.float32(num_classes)        # macro average


def _reference(logits, labels, num_classes):
    # pure-JAX reference for sanity checking (mirrors the torch path)
    probs = jax.nn.softmax(logits.astype(jnp.float32), axis=1)
    pred = jnp.argmax(probs, axis=1)
    cls = jnp.arange(num_classes)
    tp = jnp.sum((pred[:, None] == cls) & (labels[:, None] == cls),
                 axis=0).astype(jnp.float32)
    fp = jnp.sum((pred[:, None] == cls) & (labels[:, None] != cls),
                 axis=0).astype(jnp.float32)
    denom = tp + fp
    prec = jnp.where(denom > 0, tp / jnp.where(denom > 0, denom, 1.0), 0.0)
    return jnp.mean(prec)


if __name__ == "__main__":
    key = jax.random.PRNGKey(0)
    k1, k2, k3, k4, k5, k6 = jax.random.split(key, 6)

    # Case 1: small, single block / single chunk (B=8, C=4), float32.
    B1, C1 = 8, 4
    logits1 = jax.random.normal(k1, (B1, C1), dtype=jnp.float32)
    labels1 = jax.random.randint(k2, (B1,), 0, C1, dtype=jnp.int32)
    res1 = jax.block_until_ready(multi_precision(logits1, labels1, num_classes=C1))
    ref1 = _reference(logits1, labels1, C1)
    assert jnp.allclose(res1, ref1, atol=1e-6), (res1, ref1)

    # Case 2: ragged batch (pad-row correction), bf16 kept narrow end-to-end.
    B2, C2 = 37, 6
    logits2 = jax.random.normal(k3, (B2, C2), jnp.float32).astype(jnp.bfloat16)
    labels2 = jax.random.randint(k4, (B2,), 0, C2, dtype=jnp.int32)
    res2 = jax.block_until_ready(multi_precision(logits2, labels2, num_classes=C2))
    ref2 = _reference(logits2.astype(jnp.float32), labels2, C2)
    assert jnp.allclose(res2, ref2, atol=1e-6), (res2, ref2)

    # Case 3: exercises multi-block grid, multi-chunk inner loop and the
    # pad-row correction path together.
    B3, C3 = 600, 10
    logits3 = jax.random.normal(k5, (B3, C3), dtype=jnp.float32)
    labels3 = jax.random.randint(k6, (B3,), 0, C3, dtype=jnp.int32)
    res3 = jax.block_until_ready(multi_precision(logits3, labels3, num_classes=C3))
    ref3 = _reference(logits3, labels3, C3)
    assert jnp.allclose(res3, ref3, atol=1e-6), (res3, ref3)

    print("KERNEL_OK")
</pallas_src>

<mosaic_0001>
module attributes {stable_mosaic.version = 11 : i64} {
  func.func @_multi_precision_block_kernel(%arg0: i32, %arg1: memref<8x4xf32, #tpu.memory_space<vmem>>, %arg2: memref<8x1xi32, #tpu.memory_space<vmem>>, %arg3: memref<1x2x4xi32, #tpu.memory_space<vmem>>) attributes {dimension_semantics = [#tpu.dimension_semantics<parallel>], iteration_bounds = array<i64: 1>, scalar_prefetch = 0 : i64, scratch_operands = 0 : i64, tpu.core_type = #tpu.core_type<tc>, window_params = [{transform_indices = @transform_0, window_bounds = array<i64: 8, 4>}, {transform_indices = @transform_1, window_bounds = array<i64: 8, 1>}, {transform_indices = @transform_2, window_bounds = array<i64: 1, 2, 4>}]} {
    %0 = tpu.iota {dimensions = array<i32: 1>} : vector<8x4xi32>
    %c0_i32 = arith.constant 0 : i32
    %1 = vector.broadcast %c0_i32 : i32 to vector<1x4xi32>
    %c0_i32_0 = arith.constant 0 : i32
    %c8_i32 = arith.constant 8 : i32
    %2 = arith.muli %c0_i32_0, %c8_i32 : i32
    %3 = tpu.assume_multiple %2, 8 : i32
    %4 = arith.index_cast %3 : i32 to index
    %c0 = arith.constant 0 : index
    %5 = vector.load %arg1[%4, %c0] : memref<8x4xf32, #tpu.memory_space<vmem>>, vector<8x4xf32>
    %6 = arith.index_cast %3 : i32 to index
    %c0_1 = arith.constant 0 : index
    %7 = vector.load %arg2[%6, %c0_1] : memref<8x1xi32, #tpu.memory_space<vmem>>, vector<8x1xi32>
    %cst = arith.constant dense<0xFF800000> : vector<8xf32>
    %8 = vector.multi_reduction <maximumf>, %5, %cst [1] : vector<8x4xf32> to vector<8xf32>
    %9 = vector.shape_cast %8 : vector<8xf32> to vector<8x1xf32>
    %10 = vector.broadcast %9 : vector<8x1xf32> to vector<8x4xf32>
    %11 = arith.cmpf oeq, %5, %10 : vector<8x4xf32>
    %c4_i32 = arith.constant 4 : i32
    %12 = vector.broadcast %c4_i32 : i32 to vector<8x4xi32>
    %13 = arith.select %11, %0, %12 : vector<8x4xi1>, vector<8x4xi32>
    %cst_2 = arith.constant dense<2147483647> : vector<8xi32>
    %14 = vector.multi_reduction <minsi>, %13, %cst_2 [1] : vector<8x4xi32> to vector<8xi32>
    %15 = vector.shape_cast %14 : vector<8xi32> to vector<8x1xi32>
    %16 = vector.broadcast %15 : vector<8x1xi32> to vector<8x4xi32>
    %17 = arith.cmpi eq, %0, %16 : vector<8x4xi32>
    %18 = arith.cmpi eq, %15, %7 : vector<8x1xi32>
    %19 = arith.extui %17 : vector<8x4xi1> to vector<8x4xi32>
    %cst_3 = arith.constant dense<0> : vector<4xi32>
    %20 = vector.multi_reduction <add>, %19, %cst_3 [0] : vector<8x4xi32> to vector<4xi32>
    %21 = vector.shape_cast %20 : vector<4xi32> to vector<1x4xi32>
    %22 = arith.addi %1, %21 : vector<1x4xi32>
    %23 = vector.broadcast %18 : vector<8x1xi1> to vector<8x4xi1>
    %24 = arith.andi %17, %23 : vector<8x4xi1>
    %25 = arith.extui %24 : vector<8x4xi1> to vector<8x4xi32>
    %cst_4 = arith.constant dense<0> : vector<4xi32>
    %26 = vector.multi_reduction <add>, %25, %cst_4 [0] : vector<8x4xi32> to vector<4xi32>
    %27 = vector.shape_cast %26 : vector<4xi32> to vector<1x4xi32>
    %28 = arith.addi %1, %27 : vector<1x4xi32>
    %c1_i32 = arith.constant 1 : i32
    %29 = tpu.concatenate %28, %22 in 0 : vector<1x4xi32>, vector<1x4xi32> -> vector<2x4xi32>
    %30 = vector.shape_cast %29 : vector<2x4xi32> to vector<1x2x4xi32>
    %c0_5 = arith.constant 0 : index
    %c0_6 = arith.constant 0 : index
    %c0_7 = arith.constant 0 : index
    %31 = vector.load %arg3[%c0_5, %c0_6, %c0_7] : memref<1x2x4xi32, #tpu.memory_space<vmem>>, vector<1x2x4xi32>
    tpu.vector_store %arg3[%c0_5, %c0_6, %c0_7], %30 {strides = array<i32>} : memref<1x2x4xi32, #tpu.memory_space<vmem>>, vector<1x2x4xi32>,
    return
  }
  func.func @transform_0(%arg0: i32) -> (i32, i32) {
    %c0_i32 = arith.constant 0 : i32
    %c0_i32_0 = arith.constant 0 : i32
    return %arg0, %c0_i32 : i32, i32
  }
  func.func @transform_1(%arg0: i32) -> (i32, i32) {
    %c0_i32 = arith.constant 0 : i32
    %c0_i32_0 = arith.constant 0 : i32
    return %arg0, %c0_i32 : i32, i32
  }
  func.func @transform_2(%arg0: i32) -> (i32, i32, i32) {
    %c0_i32 = arith.constant 0 : i32
    %c0_i32_0 = arith.constant 0 : i32
    %c0_i32_1 = arith.constant 0 : i32
    return %arg0, %c0_i32, %c0_i32_0 : i32, i32, i32
  }
}

</mosaic_0001>

<llo_original>
// kernel: tpu_custom_call.1
$region0: #{tpu_custom_call.1}
  #allocation0 [shape = 'u32[]', space=smem, size = 0x4, offset = 0x4, fixed_abs, tag = 'smem constant byte address 0x4 - core index']
  #allocation1 [shape = 'u32[144,128]{1,0:T(1,128)}', space=vmem, size = 0x12000, scoped, tag = 'internal scratch']
  %s0 = inlined_call_operand.vmem [shape: f32[8,4], index: 0, kind: input, shape index: {}]
  %s1 = inlined_call_operand.vmem [shape: s32[8,1], index: 1, kind: input, shape index: {}]
  %s2 = inlined_call_operand.hbm [shape: s32[1,2,4], index: 2, kind: output, shape index: {}]
  %s3 = sld [smem:[#allocation0]]
  $region18: #{tpu_custom_call.1} parent=0
    _
  %s5 = ssub.s32 1, %s3
  %s6 = scalar_select 0, %s5, %s3
  $region1: #{tpu_custom_call.1} parent=0
    #allocation2 [shape = 'u8[1024]{0}', space=vmem, size = 0x400, scoped, tag = 'output window, operand 0, single buffered']
    #allocation3 [shape = 's32[1]{0}', space=sflag, size = 0x4, scoped, tag = 'scoped memory for tpu_custom_call.1']
    %7 = vsyncpa [#allocation3], 0
    // Predicated region
    $region2: #{tpu_custom_call.1} parent=1 // pred_check
      _
    $region3: #{tpu_custom_call.1} parent=1 // pred_check_branch
      %9 = sbr.rel (0) target = $region5
    $region4: #{tpu_custom_call.1} parent=1 // pred_region
      _
    $region5: #{tpu_custom_call.1} parent=1 // pred_fallthru
      _
    // Predicated region
    $region6: #{tpu_custom_call.1} parent=1 // pred_check
      _
    $region7: #{tpu_custom_call.1} parent=1 // pred_check_branch
      %11 = sbr.rel (0) target = $region9
    $region8: #{tpu_custom_call.1} parent=1 // pred_region
      _
    $region9: #{tpu_custom_call.1} parent=1 // pred_fallthru
      _
    %v12 = vlaneseq
    %v13 = vand.u32 %v12, 127
    %v14 = vld [vmem:[%s0] sm:$0xff]
    %v15 = vld [vmem:[%s1] sm:$0xff]
    %vm16 = vcmask 31744
    %v17 = vsel %vm16, %v14, -inf
    %18 = vmax.xlane.f32.xlu0 %v17
    %v19 = vpop.xlane.xlu0 %18
    %vm20 = vcmp.eq.f32.partialorder %v14, %v19
    %v21 = vsel %vm20, %v13, 4
    %v22 = vsel %vm16, %v21, 2147483647
    %v23 = vand.u32 %v22, 65535
    %v24 = vshra.s32 %v22, 16
    %v25 = vcvt.s32.f32 %v23
    %v26 = vcvt.s32.f32 %v24
    %27 = vmin.xlane.f32.xlu0 %v26
    %v28 = vpop.xlane.xlu0 %27
    %vm29 = vcmp.eq.f32.partialorder %v26, %v28
    %v30 = vsel %vm29, %v25, inf
    %31 = vmin.xlane.f32.xlu0 %v30
    %v32 = vpop.xlane.xlu0 %31
    %v33 = vcvt.f32.s32 %v32
    %v34 = vcvt.f32.s32 %v28
    %v35 = vshll.u32 %v34, 16
    %v36 = vadd.s32 %v35, %v33
    %vm37 = vcmp.eq.s32.totalorder %v13, %v36
    %vm38 = vcmp.eq.s32.totalorder %v36, %v15
    %v39 = vsel %vm37, 1, 0
    %v40 = vsel %vm16, %v39, 0
    %v41 = vrot.slane %v40, 4
    %v42 = vadd.s32 %v40, %v41
    %v43 = vrot.slane %v42, 2
    %v44 = vadd.s32 %v42, %v43
    %v45 = vrot.slane %v44, 1
    %v46 = vadd.s32 %v44, %v45
    %v47 = vsel %vm38, 1, 0
    %48 = vset.pattern.permute.xlu0 0
    %49 = vperm.xlu0 %48, %v47
    %v50 = vpop.permute.xlu0 %49
    %vm51 = vcmp.eq.s32.totalorder %v50, 1
    %vm52 = vmand %vm37, %vm51
    %v53 = vsel %vm52, 1, 0
    %v54 = vsel %vm16, %v53, 0
    %v55 = vrot.slane %v54, 4
    %v56 = vadd.s32 %v54, %v55
    %v57 = vrot.slane %v56, 2
    %v58 = vadd.s32 %v56, %v57
    %v59 = vrot.slane %v58, 1
    %v60 = vadd.s32 %v58, %v59
    %vm61 = vcmask 1040384
    %v62 = vsel %vm61, %v60, %v46
    %vm63 = vcmask 25600
    %64 = vst.msk [vmem:[#allocation2] sm:$0x3] %vm63, %v62
    // Predicated region
    $region10: #{tpu_custom_call.1} parent=1 // pred_check
      _
    $region11: #{tpu_custom_call.1} parent=1 // pred_check_branch
      %66 = sbr.rel (0) target = $region13
    $region12: #{tpu_custom_call.1} parent=1 // pred_region
      %s68 = ssub.s32 32, 32
      %69 = vsyncadd [#allocation3], %s68
      %s71 = sshll.u32 [#allocation2], 4
      %s72 = int_to_ptr.vmem [resolvable:$true] %s71
      %74 = dma.vmem_to_hbm [thread:$0]  %s72, 32, %s2, [#allocation3]
    $region13: #{tpu_custom_call.1} parent=1 // pred_fallthru
      _
    // Predicated region
    $region14: #{tpu_custom_call.1} parent=1 // pred_check
      _
    $region15: #{tpu_custom_call.1} parent=1 // pred_check_branch
      %76 = sbr.rel (0) target = $region17
    $region16: #{tpu_custom_call.1} parent=1 // pred_region
      %77 = dma.done [#allocation3], 32
    $region17: #{tpu_custom_call.1} parent=1 // pred_fallthru
      _
    %78 = vsyncpa [#allocation3], 1

</llo_original>
